<compile_context>
chip_gen: v7x
topology: tpu7x:2x2x1
jax: 0.10.0
libtpu: 0.0.40
codegen_flags: <defaults>
</compile_context>

<pallas_src>
import functools

import jax
import jax.numpy as jnp
from jax.experimental import pallas as pl
from jax.experimental.pallas import tpu as pltpu

_FDIM = 8  # distance-feature axis, zero-padded from 3 so it can ride the MXU


def rpenet_kernel(temb_ref, rd_ref, w1_ref, b1_ref, w2_ref, b2_ref,
                  w3_ref, b3_ref, out_ref):
    """One grid step = one (batch, query-tile, key-tile) block.

    temb_ref : (1, TQ, D)      f32   diffusion-time embedding
    rd_ref   : (1, TQ, TK)     f32   relative distances
    w1_ref   : (8, C_pad)      bf16  embed_distances weight^T (rows 3.. are zero)
    b1_ref   : (1, C_pad)      f32
    w2_ref   : (D, C_pad)      bf16  embed_diffusion_time weight^T
    b2_ref   : (1, C_pad)      f32
    w3_ref   : (C_pad, C_pad)  bf16  out weight^T
    b3_ref   : (1, C_pad)      f32
    out_ref  : (1, TQ, TK, C)        unpadded channels only
    """
    rd = rd_ref[0]                                        # (TQ, TK) f32
    tq, tk = rd.shape
    c_pad = w3_ref.shape[1]
    c_out = out_ref.shape[3]

    # Distance features.  rd>0 and rd<0 are exclusive, so one log1p(|rd|) plus
    # selects is exact (and cheaper/more accurate than two logs).
    l = jnp.log1p(jnp.abs(rd))                            # EUP
    zero = jnp.zeros_like(rd)
    f0 = jnp.where(rd > 0.0, l, zero)
    f1 = jnp.where(rd < 0.0, l, zero)
    f2 = (rd == 0.0).astype(jnp.float32)

    # Pack features into an (TQ*TK, 8) bf16 matrix and contract on the MXU
    # (replaces three broadcast outer products of pure VALU work).
    feats = jnp.concatenate(
        [f0[:, :, None], f1[:, :, None], f2[:, :, None],
         jnp.zeros((tq, tk, _FDIM - 3), jnp.float32)], axis=-1)   # (TQ, TK, 8)
    feats = feats.reshape(tq * tk, _FDIM).astype(jnp.bfloat16)
    dist_emb = jnp.dot(feats, w1_ref[...],
                       preferred_element_type=jnp.float32)        # (TQ*TK, C_pad)

    # Time embedding; both biases folded in here, once per (TQ, C) row instead
    # of once per (TQ, TK, C) element.
    temb_emb = (jnp.dot(temb_ref[0].astype(jnp.bfloat16), w2_ref[...],
                        preferred_element_type=jnp.float32)
                + b2_ref[...] + b1_ref[...])                      # (TQ, C_pad)

    emb = dist_emb.reshape(tq, tk, c_pad) + temb_emb[:, None, :]  # (TQ, TK, C_pad)

    # SiLU: exp and the approximate reciprocal both stay on the EUP slot.
    h = (emb * pl.reciprocal(1.0 + jnp.exp(-emb), approx=True)
         ).astype(jnp.bfloat16)                                   # (TQ, TK, C_pad)

    o = jnp.dot(h.reshape(tq * tk, c_pad), w3_ref[...],
                preferred_element_type=jnp.float32) + b3_ref[...]  # (TQ*TK, C_pad)
    if c_out != c_pad:
        o = o[:, :c_out]                                  # drop lane padding in-VMEM
    out_ref[...] = o.reshape(1, tq, tk, c_out).astype(out_ref.dtype)


def _vmem_caps():
    """(tile budget, scoped-vmem limit) in bytes, sized from the actual chip
    (64 MiB on v7x, 128 MiB on v5e/v6e) with headroom for double buffering."""
    try:
        cap = int(getattr(pltpu.get_tpu_info(), "vmem_capacity_bytes", 0)) or None
    except Exception:
        cap = None
    if cap is None:
        cap = 64 * 1024 * 1024                # conservative default (v7x-sized)
    budget = min(int(cap * 0.55), 80 * 1024 * 1024)
    limit = min(int(cap * 0.80), 100 * 1024 * 1024)
    return budget, limit


def _pick_tiles(B, T, C_pad, budget_bytes):
    """Pick (TQ, TK).  TQ is a multiple of 8 dividing T; TK is a multiple of 128
    dividing T (or T itself, which is always a legal full-dim block).  Falls back
    to single full-T blocks when T is not sublane-aligned."""
    if T % 8 != 0:
        return T, T                            # full blocks are always legal
    if T % 128 == 0:
        tk_opts = [d for d in range(min(T, 2048), 0, -128) if T % d == 0]
    else:
        tk_opts = [T]
    tq_opts = [d for d in range(T, 0, -8) if T % d == 0]   # multiples of 8, desc.
    per_qk = 7 * C_pad * 4     # live f32-equivalent slabs incl. dbl-buffered out
    best_tq, best_tk = 8, tk_opts[-1]
    for tk in tk_opts:
        cap = budget_bytes // (per_qk * tk)
        for tq in tq_opts:
            if tq <= cap:
                if tq * tk > best_tq * best_tk:
                    best_tq, best_tk = tq, tk
                break
    tq, tk = best_tq, best_tk
    # v7x megacore: expose >= 4 parallel grid steps when the shapes allow it.
    while (B * (T // tq) * (T // tk) < 4 and tq % 16 == 0
           and T % (tq // 2) == 0):
        tq //= 2
    return tq, tk


def rpenet_forward(temb, relative_distances, params, num_heads,
                   out_dtype=jnp.float32):
    """Pallas-backed RPENet forward.

    temb:               (B, T, D) float32
    relative_distances: (B, T, T) float32
    returns             (B, T, T, num_heads, C // num_heads) in `out_dtype`
                        (keep float32 to match the PyTorch reference; bf16 is an
                        opt-in bandwidth optimization).
    """
    B, T, D = temb.shape
    C = params["w1_t"].shape[1]

    # Lane-dense channel axis for the MXU: pad weights/biases with zero columns.
    # Padded channels stay exactly zero inside the kernel and are never written
    # to HBM (the output is unpadded).  Weights are pre-cast to bf16 once here.
    C_pad = ((C + 127) // 128) * 128
    pad = C_pad - C
    bf16 = jnp.bfloat16
    w1_p = jnp.pad(params["w1_t"], ((0, _FDIM - 3), (0, pad))).astype(bf16)
    w2_p = jnp.pad(params["w2_t"], ((0, 0), (0, pad))).astype(bf16)
    w3_p = jnp.pad(params["w3_t"], ((0, pad), (0, pad))).astype(bf16)
    b1_p = jnp.pad(params["b1"], ((0, 0), (0, pad)))
    b2_p = jnp.pad(params["b2"], ((0, 0), (0, pad)))
    b3_p = jnp.pad(params["b3"], ((0, 0), (0, pad)))

    budget, vmem_limit = _vmem_caps()
    TQ, TK = _pick_tiles(B, T, C_pad, budget)
    grid = (B, T // TQ, T // TK)

    out_itemsize = jnp.dtype(out_dtype).itemsize
    cost = pl.CostEstimate(
        flops=(2 * B * T * T * C_pad * C_pad            # out linear
               + 2 * B * T * T * _FDIM * C_pad          # distance-embed linear
               + 2 * B * T * D * C_pad * (T // TK)      # time-embed linear
               + 8 * B * T * T * C_pad),                # elementwise epilogue
        transcendentals=2 * B * T * T * C_pad + B * T * T,
        bytes_accessed=(4 * (B * T * D + B * T * T)
                        + out_itemsize * B * T * T * C
                        + 2 * (C_pad + _FDIM + D) * C_pad + 12 * C_pad),
    )

    out = pl.pallas_call(
        rpenet_kernel,
        out_shape=jax.ShapeDtypeStruct((B, T, T, C), out_dtype),
        grid=grid,
        in_specs=[
            pl.BlockSpec((1, TQ, D), lambda b, q, k: (b, q, 0)),       # temb
            pl.BlockSpec((1, TQ, TK), lambda b, q, k: (b, q, k)),      # rel. distances
            pl.BlockSpec((_FDIM, C_pad), lambda b, q, k: (0, 0)),      # w1_t (bf16)
            pl.BlockSpec((1, C_pad), lambda b, q, k: (0, 0)),          # b1
            pl.BlockSpec((D, C_pad), lambda b, q, k: (0, 0)),          # w2_t (bf16)
            pl.BlockSpec((1, C_pad), lambda b, q, k: (0, 0)),          # b2
            pl.BlockSpec((C_pad, C_pad), lambda b, q, k: (0, 0)),      # w3_t (bf16)
            pl.BlockSpec((1, C_pad), lambda b, q, k: (0, 0)),          # b3
        ],
        out_specs=pl.BlockSpec((1, TQ, TK, C), lambda b, q, k: (b, q, k, 0)),
        compiler_params=pltpu.CompilerParams(
            dimension_semantics=("parallel", "parallel", "parallel"),
            vmem_limit_bytes=vmem_limit),
        cost_estimate=cost,
    )(temb, relative_distances, w1_p, b1_p, w2_p, b2_p, w3_p, b3_p)

    H = num_heads
    return out.reshape(B, T, T, H, C // H)


def rpenet_reference(temb, relative_distances, params, num_heads):
    """Pure-JAX reference mirroring the PyTorch forward (f32 throughout)."""
    rd = relative_distances
    feats = jnp.stack([
        jnp.log(1.0 + jnp.clip(rd, 0.0, None)),
        jnp.log(1.0 + jnp.clip(-rd, 0.0, None)),
        (rd == 0.0).astype(jnp.float32),
    ], axis=-1)                                                    # (B,T,T,3)
    B, T, _ = rd.shape
    C = params["w1_t"].shape[1]
    emb_t = temb @ params["w2_t"] + params["b2"][0]                # (B,T,C)
    emb = emb_t[:, :, None, :] + (feats @ params["w1_t"] + params["b1"][0])
    h = emb * jax.nn.sigmoid(emb)
    out = h @ params["w3_t"] + params["b3"][0]
    return out.reshape(B, T, T, num_heads, C // num_heads)


def init_params(key, channels, time_embed_dim):
    k1, k2, k3, k4, k5, k6 = jax.random.split(key, 6)
    s = 0.1
    return {
        # nn.Linear(3, C)    -> weight (C,3), stored transposed (3,C)
        "w1_t": s * jax.random.normal(k1, (3, channels), jnp.float32),
        "b1":   s * jax.random.normal(k2, (1, channels), jnp.float32),
        # nn.Linear(tdim, C) -> stored transposed (tdim, C)
        "w2_t": s * jax.random.normal(k3, (time_embed_dim, channels), jnp.float32),
        "b2":   s * jax.random.normal(k4, (1, channels), jnp.float32),
        # nn.Linear(C, C)    -> stored transposed (C, C)
        # (PyTorch zeroes these at init; kept non-zero here to exercise compute)
        "w3_t": s * jax.random.normal(k5, (channels, channels), jnp.float32),
        "b3":   s * jax.random.normal(k6, (1, channels), jnp.float32),
    }


if __name__ == "__main__":
    B, T = 2, 8
    channels = 32
    num_heads = 4
    time_embed_dim = 32

    key = jax.random.PRNGKey(0)
    kp, kt, kr = jax.random.split(key, 3)

    params = init_params(kp, channels, time_embed_dim)
    temb = jax.random.normal(kt, (B, T, time_embed_dim), jnp.float32)
    relative_distances = jax.random.randint(
        kr, (B, T, T), -5, 6).astype(jnp.float32)

    fwd = jax.jit(functools.partial(rpenet_forward, num_heads=num_heads))
    out = fwd(temb, relative_distances, params)
    out = jax.block_until_ready(out)

    ref = rpenet_reference(temb, relative_distances, params, num_heads)
    assert out.shape == (B, T, T, num_heads, channels // num_heads), out.shape
    # bf16 MXU inputs (f32 accumulation) + approx reciprocal -> loosened tolerance.
    assert jnp.allclose(out, ref, atol=2e-2, rtol=2e-2), "mismatch vs reference"

    print("KERNEL_OK")
</pallas_src>

<mosaic_0001>
module attributes {stable_mosaic.version = 11 : i64} {
  func.func @rpenet_kernel(%arg0: i32, %arg1: i32, %arg2: i32, %arg3: memref<1x8x32xf32, #tpu.memory_space<vmem>>, %arg4: memref<1x8x8xf32, #tpu.memory_space<vmem>>, %arg5: memref<8x128xbf16, #tpu.memory_space<vmem>>, %arg6: memref<1x128xf32, #tpu.memory_space<vmem>>, %arg7: memref<32x128xbf16, #tpu.memory_space<vmem>>, %arg8: memref<1x128xf32, #tpu.memory_space<vmem>>, %arg9: memref<128x128xbf16, #tpu.memory_space<vmem>>, %arg10: memref<1x128xf32, #tpu.memory_space<vmem>>, %arg11: memref<1x8x8x32xf32, #tpu.memory_space<vmem>>) attributes {dimension_semantics = [#tpu.dimension_semantics<parallel>, #tpu.dimension_semantics<parallel>, #tpu.dimension_semantics<parallel>], iteration_bounds = array<i64: 2, 1, 1>, scalar_prefetch = 0 : i64, scratch_operands = 0 : i64, tpu.core_type = #tpu.core_type<tc>, window_params = [{transform_indices = @transform_0, window_bounds = array<i64: 1, 8, 32>}, {transform_indices = @transform_1, window_bounds = array<i64: 1, 8, 8>}, {pipeline_mode = #tpu.pipeline_mode<synchronous>, transform_indices = @transform_2, window_bounds = array<i64: 8, 128>}, {pipeline_mode = #tpu.pipeline_mode<synchronous>, transform_indices = @transform_3, window_bounds = array<i64: 1, 128>}, {pipeline_mode = #tpu.pipeline_mode<synchronous>, transform_indices = @transform_4, window_bounds = array<i64: 32, 128>}, {pipeline_mode = #tpu.pipeline_mode<synchronous>, transform_indices = @transform_5, window_bounds = array<i64: 1, 128>}, {pipeline_mode = #tpu.pipeline_mode<synchronous>, transform_indices = @transform_6, window_bounds = array<i64: 128, 128>}, {pipeline_mode = #tpu.pipeline_mode<synchronous>, transform_indices = @transform_7, window_bounds = array<i64: 1, 128>}, {transform_indices = @transform_8, window_bounds = array<i64: 1, 8, 8, 32>}]} {
    %c0 = arith.constant 0 : index
    %c0_0 = arith.constant 0 : index
    %c0_1 = arith.constant 0 : index
    %0 = vector.load %arg4[%c0, %c0_0, %c0_1] : memref<1x8x8xf32, #tpu.memory_space<vmem>>, vector<1x8x8xf32>
    %1 = vector.shape_cast %0 : vector<1x8x8xf32> to vector<8x8xf32>
    %2 = math.absf %1 : vector<8x8xf32>
    %3 = math.log1p %2 : vector<8x8xf32>
    %cst = arith.constant 0.000000e+00 : f32
    %4 = vector.broadcast %cst : f32 to vector<8x8xf32>
    %cst_2 = arith.constant 0.000000e+00 : f32
    %5 = vector.broadcast %cst_2 : f32 to vector<8x8xf32>
    %6 = arith.cmpf ogt, %1, %5 : vector<8x8xf32>
    %7 = arith.select %6, %3, %4 : vector<8x8xi1>, vector<8x8xf32>
    %cst_3 = arith.constant 0.000000e+00 : f32
    %8 = vector.broadcast %cst_3 : f32 to vector<8x8xf32>
    %9 = arith.cmpf olt, %1, %8 : vector<8x8xf32>
    %10 = arith.select %9, %3, %4 : vector<8x8xi1>, vector<8x8xf32>
    %cst_4 = arith.constant 0.000000e+00 : f32
    %11 = vector.broadcast %cst_4 : f32 to vector<8x8xf32>
    %12 = arith.cmpf oeq, %1, %11 : vector<8x8xf32>
    %13 = arith.extui %12 : vector<8x8xi1> to vector<8x8xi32>
    %14 = arith.sitofp %13 : vector<8x8xi32> to vector<8x8xf32>
    %15 = vector.shape_cast %7 : vector<8x8xf32> to vector<8x8x1xf32>
    %16 = vector.shape_cast %10 : vector<8x8xf32> to vector<8x8x1xf32>
    %17 = vector.shape_cast %14 : vector<8x8xf32> to vector<8x8x1xf32>
    %cst_5 = arith.constant 0.000000e+00 : f32
    %18 = vector.broadcast %cst_5 : f32 to vector<8x8x5xf32>
    %19 = tpu.concatenate %15, %16, %17, %18 in 2 : vector<8x8x1xf32>, vector<8x8x1xf32>, vector<8x8x1xf32>, vector<8x8x5xf32> -> vector<8x8x8xf32>
    %20 = vector.shape_cast %19 : vector<8x8x8xf32> to vector<64x8xf32>
    %21 = arith.truncf %20 : vector<64x8xf32> to vector<64x8xbf16>
    %c0_6 = arith.constant 0 : index
    %c0_7 = arith.constant 0 : index
    %22 = vector.load %arg5[%c0_6, %c0_7] : memref<8x128xbf16, #tpu.memory_space<vmem>>, vector<8x128xbf16>
    %cst_8 = arith.constant dense<0.000000e+00> : vector<64x128xf32>
    %23 = tpu.matmul %21, %22, %cst_8 {dimension_numbers = #tpu.dot_dimension_numbers<[1], [0], [0], [1], [0, 0, 1, 1], [], []>} : vector<64x8xbf16>, vector<8x128xbf16>, vector<64x128xf32> -> vector<64x128xf32>
    %c0_9 = arith.constant 0 : index
    %c0_10 = arith.constant 0 : index
    %c0_11 = arith.constant 0 : index
    %24 = vector.load %arg3[%c0_9, %c0_10, %c0_11] : memref<1x8x32xf32, #tpu.memory_space<vmem>>, vector<1x8x32xf32>
    %25 = vector.shape_cast %24 : vector<1x8x32xf32> to vector<8x32xf32>
    %26 = arith.truncf %25 : vector<8x32xf32> to vector<8x32xbf16>
    %c0_12 = arith.constant 0 : index
    %c0_13 = arith.constant 0 : index
    %27 = vector.load %arg7[%c0_12, %c0_13] : memref<32x128xbf16, #tpu.memory_space<vmem>>, vector<32x128xbf16>
    %cst_14 = arith.constant dense<0.000000e+00> : vector<8x128xf32>
    %28 = tpu.matmul %26, %27, %cst_14 {dimension_numbers = #tpu.dot_dimension_numbers<[1], [0], [0], [1], [0, 0, 1, 1], [], []>} : vector<8x32xbf16>, vector<32x128xbf16>, vector<8x128xf32> -> vector<8x128xf32>
    %c0_15 = arith.constant 0 : index
    %c0_16 = arith.constant 0 : index
    %29 = vector.load %arg8[%c0_15, %c0_16] : memref<1x128xf32, #tpu.memory_space<vmem>>, vector<1x128xf32>
    %30 = vector.broadcast %29 : vector<1x128xf32> to vector<8x128xf32>
    %31 = arith.addf %28, %30 : vector<8x128xf32>
    %c0_17 = arith.constant 0 : index
    %c0_18 = arith.constant 0 : index
    %32 = vector.load %arg6[%c0_17, %c0_18] : memref<1x128xf32, #tpu.memory_space<vmem>>, vector<1x128xf32>
    %33 = vector.broadcast %32 : vector<1x128xf32> to vector<8x128xf32>
    %34 = arith.addf %31, %33 : vector<8x128xf32>
    %35 = vector.shape_cast %23 : vector<64x128xf32> to vector<8x8x128xf32>
    %36 = vector.shape_cast %34 : vector<8x128xf32> to vector<8x1x128xf32>
    %37 = vector.broadcast %36 : vector<8x1x128xf32> to vector<8x8x128xf32>
    %38 = arith.addf %35, %37 : vector<8x8x128xf32>
    %cst_19 = arith.constant 0.000000e+00 : f32
    %39 = vector.broadcast %cst_19 : f32 to vector<8x8x128xf32>
    %40 = arith.subf %39, %38 : vector<8x8x128xf32>
    %41 = math.exp %40 : vector<8x8x128xf32>
    %cst_20 = arith.constant 1.000000e+00 : f32
    %42 = vector.broadcast %cst_20 : f32 to vector<8x8x128xf32>
    %43 = arith.addf %42, %41 : vector<8x8x128xf32>
    %44 = tpu.reciprocal %43 {approx = true} : vector<8x8x128xf32> -> vector<8x8x128xf32>
    %45 = arith.mulf %38, %44 : vector<8x8x128xf32>
    %46 = arith.truncf %45 : vector<8x8x128xf32> to vector<8x8x128xbf16>
    %47 = vector.shape_cast %46 : vector<8x8x128xbf16> to vector<64x128xbf16>
    %c0_21 = arith.constant 0 : index
    %c0_22 = arith.constant 0 : index
    %48 = vector.load %arg9[%c0_21, %c0_22] : memref<128x128xbf16, #tpu.memory_space<vmem>>, vector<128x128xbf16>
    %cst_23 = arith.constant dense<0.000000e+00> : vector<64x128xf32>
    %49 = tpu.matmul %47, %48, %cst_23 {dimension_numbers = #tpu.dot_dimension_numbers<[1], [0], [0], [1], [0, 0, 1, 1], [], []>} : vector<64x128xbf16>, vector<128x128xbf16>, vector<64x128xf32> -> vector<64x128xf32>
    %c0_24 = arith.constant 0 : index
    %c0_25 = arith.constant 0 : index
    %50 = vector.load %arg10[%c0_24, %c0_25] : memref<1x128xf32, #tpu.memory_space<vmem>>, vector<1x128xf32>
    %51 = vector.broadcast %50 : vector<1x128xf32> to vector<64x128xf32>
    %52 = arith.addf %49, %51 : vector<64x128xf32>
    %53 = vector.extract_strided_slice %52 {offsets = [0, 0], sizes = [64, 32], strides = [1, 1]} : vector<64x128xf32> to vector<64x32xf32>
    %54 = vector.shape_cast %53 : vector<64x32xf32> to vector<1x8x8x32xf32>
    %c0_26 = arith.constant 0 : index
    %c0_27 = arith.constant 0 : index
    %c0_28 = arith.constant 0 : index
    %c0_29 = arith.constant 0 : index
    %55 = vector.load %arg11[%c0_26, %c0_27, %c0_28, %c0_29] : memref<1x8x8x32xf32, #tpu.memory_space<vmem>>, vector<1x8x8x32xf32>
    tpu.vector_store %arg11[%c0_26, %c0_27, %c0_28, %c0_29], %54 {strides = array<i32>} : memref<1x8x8x32xf32, #tpu.memory_space<vmem>>, vector<1x8x8x32xf32>,
    return
  }
  func.func @transform_0(%arg0: i32, %arg1: i32, %arg2: i32) -> (i32, i32, i32) {
    %c0_i32 = arith.constant 0 : i32
    %c0_i32_0 = arith.constant 0 : i32
    return %arg0, %arg1, %c0_i32 : i32, i32, i32
  }
  func.func @transform_1(%arg0: i32, %arg1: i32, %arg2: i32) -> (i32, i32, i32) {
    %c0_i32 = arith.constant 0 : i32
    return %arg0, %arg1, %arg2 : i32, i32, i32
  }
  func.func @transform_2(%arg0: i32, %arg1: i32, %arg2: i32) -> (i32, i32) {
    %c0_i32 = arith.constant 0 : i32
    %c0_i32_0 = arith.constant 0 : i32
    %c0_i32_1 = arith.constant 0 : i32
    return %c0_i32, %c0_i32_0 : i32, i32
  }
  func.func @transform_3(%arg0: i32, %arg1: i32, %arg2: i32) -> (i32, i32) {
    %c0_i32 = arith.constant 0 : i32
    %c0_i32_0 = arith.constant 0 : i32
    %c0_i32_1 = arith.constant 0 : i32
    return %c0_i32, %c0_i32_0 : i32, i32
  }
  func.func @transform_4(%arg0: i32, %arg1: i32, %arg2: i32) -> (i32, i32) {
    %c0_i32 = arith.constant 0 : i32
    %c0_i32_0 = arith.constant 0 : i32
    %c0_i32_1 = arith.constant 0 : i32
    return %c0_i32, %c0_i32_0 : i32, i32
  }
  func.func @transform_5(%arg0: i32, %arg1: i32, %arg2: i32) -> (i32, i32) {
    %c0_i32 = arith.constant 0 : i32
    %c0_i32_0 = arith.constant 0 : i32
    %c0_i32_1 = arith.constant 0 : i32
    return %c0_i32, %c0_i32_0 : i32, i32
  }
  func.func @transform_6(%arg0: i32, %arg1: i32, %arg2: i32) -> (i32, i32) {
    %c0_i32 = arith.constant 0 : i32
    %c0_i32_0 = arith.constant 0 : i32
    %c0_i32_1 = arith.constant 0 : i32
    return %c0_i32, %c0_i32_0 : i32, i32
  }
  func.func @transform_7(%arg0: i32, %arg1: i32, %arg2: i32) -> (i32, i32) {
    %c0_i32 = arith.constant 0 : i32
    %c0_i32_0 = arith.constant 0 : i32
    %c0_i32_1 = arith.constant 0 : i32
    return %c0_i32, %c0_i32_0 : i32, i32
  }
  func.func @transform_8(%arg0: i32, %arg1: i32, %arg2: i32) -> (i32, i32, i32, i32) {
    %c0_i32 = arith.constant 0 : i32
    %c0_i32_0 = arith.constant 0 : i32
    return %arg0, %arg1, %arg2, %c0_i32 : i32, i32, i32, i32
  }
}

</mosaic_0001>

<llo_original>
// kernel: rpenet_forward.1
$region0: #{rpenet_forward.1}
  #allocation0 [shape = 'u32[]', space=smem, size = 0x4, offset = 0x4, fixed_abs, tag = 'smem constant byte address 0x4 - core index']
  #allocation1 [shape = 'u32[144,128]{1,0:T(1,128)}', space=vmem, size = 0x12000, scoped, tag = 'internal scratch']
  %s0 = inlined_call_operand.vmem [shape: f32[2,8,32], index: 0, kind: input, shape index: {}]
  %s1 = inlined_call_operand.vmem [shape: f32[2,8,8], index: 1, kind: input, shape index: {}]
  %s2 = inlined_call_operand.vmem [shape: bf16[8,128], index: 2, kind: input, shape index: {}]
  %s3 = inlined_call_operand.vmem [shape: f32[1,128], index: 3, kind: input, shape index: {}]
  %s4 = inlined_call_operand.vmem [shape: bf16[32,128], index: 4, kind: input, shape index: {}]
  %s5 = inlined_call_operand.vmem [shape: f32[1,128], index: 5, kind: input, shape index: {}]
  %s6 = inlined_call_operand.vmem [shape: bf16[128,128], index: 6, kind: input, shape index: {}]
  %s7 = inlined_call_operand.vmem [shape: f32[1,128], index: 7, kind: input, shape index: {}]
  %s8 = inlined_call_operand.vmem [shape: f32[2,8,8,32], index: 8, kind: output, shape index: {}]
  %s9 = sld [smem:[#allocation0]]
  $region65: #{rpenet_forward.1} parent=0
    _
  %s11 = ssub.s32 1, %s9
  %s12 = scalar_select 0, %s11, %s9
  loop: start=0, step=1, limit=4
  $region2: #{rpenet_forward.1} parent=0 // loop_pre_header
    _
  $region3: #{rpenet_forward.1} parent=0 // loop_header
    %s14 = sphi 0, %s18
    %p15 = scmp.ge.s32.totalorder %s14, 4
    %s21 = sphi 0, %s40
    %s22 = sphi 0, %s36
    %s23 = sphi 0, %s32
    %s24 = sphi 0, %s21
    %s25 = sphi 0, %s22
    %s26 = sphi 0, %s23
    %s27 = sphi 0, %s24
    %s28 = sphi 0, %s25
    %s29 = sphi 0, %s26
    %s45 = sphi 0, %s47
    %s48 = sphi 0, %s45
    %s49 = sphi 0, %s48
    %s65 = sphi 0, %s49
    %s75 = sphi 0, %s77
    %s78 = sphi 0, %s75
    %s79 = sphi 0, %s78
    %s95 = sphi 0, %s79
    %s99 = sphi 0, %s99
    %s101 = sphi 0, %s99
    %s102 = sphi 0, %s101
    %s116 = sphi 0, %s102
    %s120 = sphi 0, %s120
    %s122 = sphi 0, %s120
    %s123 = sphi 0, %s122
    %s137 = sphi 0, %s123
    %s141 = sphi 0, %s141
    %s143 = sphi 0, %s141
    %s144 = sphi 0, %s143
    %s158 = sphi 0, %s144
    %s162 = sphi 0, %s162
    %s164 = sphi 0, %s162
    %s165 = sphi 0, %s164
    %s179 = sphi 0, %s165
    %s183 = sphi 0, %s183
    %s185 = sphi 0, %s183
    %s186 = sphi 0, %s185
    %s200 = sphi 0, %s186
    %s204 = sphi 0, %s204
    %s206 = sphi 0, %s204
    %s207 = sphi 0, %s206
    %s221 = sphi 0, %s207
    %s231 = sphi 0, %s233
    %s234 = sphi 0, %s231
    %s235 = sphi 0, %s234
    %s251 = sphi 0, %s235
  $region4: #{rpenet_forward.1} parent=0 // loop_header_branch
    %17 = sbr.rel (%p15) target = $region8
  $region5: #{rpenet_forward.1} parent=0 // loop_body
    %s19 = ssub.s32 %s14, 1
    %s20 = ssub.s32 %s14, 2
    %s30 = sadd.s32 1, %s23
    %p31 = scmp.ge.s32.totalorder %s30, 1
    %s32 = scalar_select %p31, 0, %s30
    %s33 = sadd.s32 1, %s22
    %s34 = scalar_select %p31, %s33, %s22
    %p35 = scmp.ge.s32.totalorder %s34, 1
    %s36 = scalar_select %p35, 0, %s34
    %s37 = sadd.s32 1, %s21
    %s38 = scalar_select %p35, %s37, %s21
    %p39 = scmp.ge.s32.totalorder %s38, 2
    %s40 = scalar_select %p39, 0, %s38
    %s41 = ssub.s32 %s21, %s40
    %s42 = ssub.s32 %s22, %s36
    %s43 = sor.u32 %s41, %s42
    %p44 = scmp.eq.s32.totalorder %s43, 0
    %s46 = sadd.s32 %s45, 1
    %s47 = scalar_select %p44, %s45, %s46
    %p50 = pneg %p44
    %p51 = scmp.eq.s32.totalorder %s14, 1
    %p52 = por %p50, %p51
    %p53 = scmp.ne.s32.totalorder %s45, %s48
    %p54 = scmp.eq.s32.totalorder %s14, 0
    %p55 = por %p53, %p54
    %p56 = scmp.ne.s32.totalorder %s45, %s48
    %p57 = scmp.eq.s32.totalorder %s19, 1
    %p58 = por %p56, %p57
    %p59 = scmp.ne.s32.totalorder %s48, %s49
    %p60 = scmp.eq.s32.totalorder %s19, 0
    %p61 = por %p59, %p60
    %p62 = scmp.ne.s32.totalorder %s48, %s49
    %p63 = scmp.eq.s32.totalorder %s20, 1
    %p64 = por %p62, %p63
    %p66 = scmp.ne.s32.totalorder %s49, %s65
    %p67 = scmp.eq.s32.totalorder %s20, 0
    %p68 = por %p66, %p67
    %s69 = ssub.s32 %s21, %s40
    %s70 = ssub.s32 %s22, %s36
    %s71 = sor.u32 %s69, %s70
    %s72 = ssub.s32 %s23, %s32
    %s73 = sor.u32 %s71, %s72
    %p74 = scmp.eq.s32.totalorder %s73, 0
    %s76 = sadd.s32 %s75, 1
    %s77 = scalar_select %p74, %s75, %s76
    %p80 = pneg %p74
    %p81 = scmp.eq.s32.totalorder %s14, 1
    %p82 = por %p80, %p81
    %p83 = scmp.ne.s32.totalorder %s75, %s78
    %p84 = scmp.eq.s32.totalorder %s14, 0
    %p85 = por %p83, %p84
    %p86 = scmp.ne.s32.totalorder %s75, %s78
    %p87 = scmp.eq.s32.totalorder %s19, 1
    %p88 = por %p86, %p87
    %p89 = scmp.ne.s32.totalorder %s78, %s79
    %p90 = scmp.eq.s32.totalorder %s19, 0
    %p91 = por %p89, %p90
    %p92 = scmp.ne.s32.totalorder %s78, %s79
    %p93 = scmp.eq.s32.totalorder %s20, 1
    %p94 = por %p92, %p93
    %p96 = scmp.ne.s32.totalorder %s79, %s95
    %p97 = scmp.eq.s32.totalorder %s20, 0
    %p98 = por %p96, %p97
    %s100 = sadd.s32 %s99, 1
    %p103 = scmp.eq.s32.totalorder %s14, 1
    %p104 = scmp.ne.s32.totalorder %s99, %s101
    %p105 = scmp.eq.s32.totalorder %s14, 0
    %p106 = por %p104, %p105
    %p107 = scmp.ne.s32.totalorder %s99, %s101
    %p108 = scmp.eq.s32.totalorder %s19, 1
    %p109 = por %p107, %p108
    %p110 = scmp.ne.s32.totalorder %s101, %s102
    %p111 = scmp.eq.s32.totalorder %s19, 0
    %p112 = por %p110, %p111
    %p113 = scmp.ne.s32.totalorder %s101, %s102
    %p114 = scmp.eq.s32.totalorder %s20, 1
    %p115 = por %p113, %p114
    %p117 = scmp.ne.s32.totalorder %s102, %s116
    %p118 = scmp.eq.s32.totalorder %s20, 0
    %p119 = por %p117, %p118
    %s121 = sadd.s32 %s120, 1
    %p124 = scmp.eq.s32.totalorder %s14, 1
    %p125 = scmp.ne.s32.totalorder %s120, %s122
    %p126 = scmp.eq.s32.totalorder %s14, 0
    %p127 = por %p125, %p126
    %p128 = scmp.ne.s32.totalorder %s120, %s122
    %p129 = scmp.eq.s32.totalorder %s19, 1
    %p130 = por %p128, %p129
    %p131 = scmp.ne.s32.totalorder %s122, %s123
    %p132 = scmp.eq.s32.totalorder %s19, 0
    %p133 = por %p131, %p132
    %p134 = scmp.ne.s32.totalorder %s122, %s123
    %p135 = scmp.eq.s32.totalorder %s20, 1
    %p136 = por %p134, %p135
    %p138 = scmp.ne.s32.totalorder %s123, %s137
    %p139 = scmp.eq.s32.totalorder %s20, 0
    %p140 = por %p138, %p139
    %s142 = sadd.s32 %s141, 1
    %p145 = scmp.eq.s32.totalorder %s14, 1
    %p146 = scmp.ne.s32.totalorder %s141, %s143
    %p147 = scmp.eq.s32.totalorder %s14, 0
    %p148 = por %p146, %p147
    %p149 = scmp.ne.s32.totalorder %s141, %s143
    %p150 = scmp.eq.s32.totalorder %s19, 1
    %p151 = por %p149, %p150
    %p152 = scmp.ne.s32.totalorder %s143, %s144
    %p153 = scmp.eq.s32.totalorder %s19, 0
    %p154 = por %p152, %p153
    %p155 = scmp.ne.s32.totalorder %s143, %s144
    %p156 = scmp.eq.s32.totalorder %s20, 1
    %p157 = por %p155, %p156
    %p159 = scmp.ne.s32.totalorder %s144, %s158
    %p160 = scmp.eq.s32.totalorder %s20, 0
    %p161 = por %p159, %p160
    %s163 = sadd.s32 %s162, 1
    %p166 = scmp.eq.s32.totalorder %s14, 1
    %p167 = scmp.ne.s32.totalorder %s162, %s164
    %p168 = scmp.eq.s32.totalorder %s14, 0
    %p169 = por %p167, %p168
    %p170 = scmp.ne.s32.totalorder %s162, %s164
    %p171 = scmp.eq.s32.totalorder %s19, 1
    %p172 = por %p170, %p171
    %p173 = scmp.ne.s32.totalorder %s164, %s165
    %p174 = scmp.eq.s32.totalorder %s19, 0
    %p175 = por %p173, %p174
    %p176 = scmp.ne.s32.totalorder %s164, %s165
    %p177 = scmp.eq.s32.totalorder %s20, 1
    %p178 = por %p176, %p177
    %p180 = scmp.ne.s32.totalorder %s165, %s179
    %p181 = scmp.eq.s32.totalorder %s20, 0
    %p182 = por %p180, %p181
    %s184 = sadd.s32 %s183, 1
    %p187 = scmp.eq.s32.totalorder %s14, 1
    %p188 = scmp.ne.s32.totalorder %s183, %s185
    %p189 = scmp.eq.s32.totalorder %s14, 0
    %p190 = por %p188, %p189
    %p191 = scmp.ne.s32.totalorder %s183, %s185
    %p192 = scmp.eq.s32.totalorder %s19, 1
    %p193 = por %p191, %p192
    %p194 = scmp.ne.s32.totalorder %s185, %s186
    %p195 = scmp.eq.s32.totalorder %s19, 0
    %p196 = por %p194, %p195
    %p197 = scmp.ne.s32.totalorder %s185, %s186
    %p198 = scmp.eq.s32.totalorder %s20, 1
    %p199 = por %p197, %p198
    %p201 = scmp.ne.s32.totalorder %s186, %s200
    %p202 = scmp.eq.s32.totalorder %s20, 0
    %p203 = por %p201, %p202
    %s205 = sadd.s32 %s204, 1
    %p208 = scmp.eq.s32.totalorder %s14, 1
    %p209 = scmp.ne.s32.totalorder %s204, %s206
    %p210 = scmp.eq.s32.totalorder %s14, 0
    %p211 = por %p209, %p210
    %p212 = scmp.ne.s32.totalorder %s204, %s206
    %p213 = scmp.eq.s32.totalorder %s19, 1
    %p214 = por %p212, %p213
    %p215 = scmp.ne.s32.totalorder %s206, %s207
    %p216 = scmp.eq.s32.totalorder %s19, 0
    %p217 = por %p215, %p216
    %p218 = scmp.ne.s32.totalorder %s206, %s207
    %p219 = scmp.eq.s32.totalorder %s20, 1
    %p220 = por %p218, %p219
    %p222 = scmp.ne.s32.totalorder %s207, %s221
    %p223 = scmp.eq.s32.totalorder %s20, 0
    %p224 = por %p222, %p223
    %s225 = ssub.s32 %s21, %s40
    %s226 = ssub.s32 %s22, %s36
    %s227 = sor.u32 %s225, %s226
    %s228 = ssub.s32 %s23, %s32
    %s229 = sor.u32 %s227, %s228
    %p230 = scmp.eq.s32.totalorder %s229, 0
    %s232 = sadd.s32 %s231, 1
    %s233 = scalar_select %p230, %s231, %s232
    %p236 = pneg %p230
    %p237 = scmp.eq.s32.totalorder %s14, 1
    %p238 = por %p236, %p237
    %p239 = scmp.ne.s32.totalorder %s231, %s234
    %p240 = scmp.eq.s32.totalorder %s14, 0
    %p241 = por %p239, %p240
    %p242 = scmp.ne.s32.totalorder %s231, %s234
    %p243 = scmp.eq.s32.totalorder %s19, 1
    %p244 = por %p242, %p243
    %p245 = scmp.ne.s32.totalorder %s234, %s235
    %p246 = scmp.eq.s32.totalorder %s19, 0
    %p247 = por %p245, %p246
    %p248 = scmp.ne.s32.totalorder %s234, %s235
    %p249 = scmp.eq.s32.totalorder %s20, 1
    %p250 = por %p248, %p249
    %p252 = scmp.ne.s32.totalorder %s235, %s251
    %p253 = scmp.eq.s32.totalorder %s20, 0
    %p254 = por %p252, %p253
    %p255 = scmp.le.s32.totalorder 1, %s14
    %p256 = scmp.lt.s32.totalorder %s14, 3
    %p257 = pnand %p255, %p256
    %p258 = pneg %p257
    // Predicated region
    $region9: #{rpenet_forward.1} parent=5 // pred_check
      _
    $region10: #{rpenet_forward.1} parent=5 // pred_check_branch
      %260 = sbr.rel (%p257) target = $region12
    $region11: #{rpenet_forward.1} parent=5 // pred_region
      %s261 = ssub.s32 %s14, 1
      // Predicated region
      $region13: #{rpenet_forward.1} parent=11 // pred_check
        %p262 = pneg %p112
      $region14: #{rpenet_forward.1} parent=11 // pred_check_branch
        %264 = sbr.rel (%p262) target = $region16
      $region15: #{rpenet_forward.1} parent=11 // pred_region
        _
      $region16: #{rpenet_forward.1} parent=11 // pred_fallthru
        _
      // Predicated region
      $region17: #{rpenet_forward.1} parent=11 // pred_check
        %p265 = pneg %p133
      $region18: #{rpenet_forward.1} parent=11 // pred_check_branch
        %267 = sbr.rel (%p265) target = $region20
      $region19: #{rpenet_forward.1} parent=11 // pred_region
        _
      $region20: #{rpenet_forward.1} parent=11 // pred_fallthru
        _
      // Predicated region
      $region21: #{rpenet_forward.1} parent=11 // pred_check
        %p268 = pneg %p154
      $region22: #{rpenet_forward.1} parent=11 // pred_check_branch
        %270 = sbr.rel (%p268) target = $region24
      $region23: #{rpenet_forward.1} parent=11 // pred_region
        _
      $region24: #{rpenet_forward.1} parent=11 // pred_fallthru
        _
      // Predicated region
      $region25: #{rpenet_forward.1} parent=11 // pred_check
        %p271 = pneg %p175
      $region26: #{rpenet_forward.1} parent=11 // pred_check_branch
        %273 = sbr.rel (%p271) target = $region28
      $region27: #{rpenet_forward.1} parent=11 // pred_region
        _
      $region28: #{rpenet_forward.1} parent=11 // pred_fallthru
        _
      // Predicated region
      $region29: #{rpenet_forward.1} parent=11 // pred_check
        %p274 = pneg %p196
      $region30: #{rpenet_forward.1} parent=11 // pred_check_branch
        %276 = sbr.rel (%p274) target = $region32
      $region31: #{rpenet_forward.1} parent=11 // pred_region
        _
      $region32: #{rpenet_forward.1} parent=11 // pred_fallthru
        _
      // Predicated region
      $region33: #{rpenet_forward.1} parent=11 // pred_check
        %p277 = pneg %p217
      $region34: #{rpenet_forward.1} parent=11 // pred_check_branch
        %279 = sbr.rel (%p277) target = $region36
      $region35: #{rpenet_forward.1} parent=11 // pred_region
        _
      $region36: #{rpenet_forward.1} parent=11 // pred_fallthru
        _
    $region12: #{rpenet_forward.1} parent=5 // pred_fallthru
      _
    %p280 = scmp.lt.s32.totalorder %s14, 2
    // Predicated region
    $region37: #{rpenet_forward.1} parent=5 // pred_check
      %p281 = pneg %p280
    $region38: #{rpenet_forward.1} parent=5 // pred_check_branch
      %283 = sbr.rel (%p281) target = $region40
    $region39: #{rpenet_forward.1} parent=5 // pred_region
      // Predicated region
      $region41: #{rpenet_forward.1} parent=39 // pred_check
        %p284 = pneg %p55
      $region42: #{rpenet_forward.1} parent=39 // pred_check_branch
        %286 = sbr.rel (%p284) target = $region44
      $region43: #{rpenet_forward.1} parent=39 // pred_region
        %p287 = scmp.lt.s32.totalorder %s21, 1
        %s288 = scalar_select %p287, %s21, 1
        %p289 = scmp.lt.s32.totalorder %s22, 0
        %s290 = scalar_select %p289, %s22, 0
        %s291 = sadd.s32 %s290, %s288
        %s292 = smul.addr %s291, 8
        %s293 = scalar_lea.vmem %s0, %s292
      $region44: #{rpenet_forward.1} parent=39 // pred_fallthru
        _
      // Predicated region
      $region45: #{rpenet_forward.1} parent=39 // pred_check
        %p294 = pneg %p85
      $region46: #{rpenet_forward.1} parent=39 // pred_check_branch
        %296 = sbr.rel (%p294) target = $region48
      $region47: #{rpenet_forward.1} parent=39 // pred_region
        %p297 = scmp.lt.s32.totalorder %s21, 1
        %s298 = scalar_select %p297, %s21, 1
        %p299 = scmp.lt.s32.totalorder %s22, 0
        %s300 = scalar_select %p299, %s22, 0
        %p301 = scmp.lt.s32.totalorder %s23, 0
        %s302 = scalar_select %p301, %s23, 0
        %s303 = sadd.s32 %s302, %s300
        %s304 = sadd.s32 %s303, %s298
        %s305 = smul.addr %s304, 8
        %s306 = scalar_lea.vmem %s1, %s305
      $region48: #{rpenet_forward.1} parent=39 // pred_fallthru
        _
    $region40: #{rpenet_forward.1} parent=5 // pred_fallthru
      _
    %p307 = scmp.le.s32.totalorder 1, %s14
    %p308 = scmp.lt.s32.totalorder %s14, 3
    %p309 = pnand %p307, %p308
    %p310 = pneg %p309
    // Predicated region
    $region49: #{rpenet_forward.1} parent=5 // pred_check
      _
    $region50: #{rpenet_forward.1} parent=5 // pred_check_branch
      %312 = sbr.rel (%p309) target = $region52
    $region51: #{rpenet_forward.1} parent=5 // pred_region
      %s313 = ssub.s32 %s14, 1
      %p314 = scmp.lt.s32.totalorder %s24, 1
      %s315 = scalar_select %p314, %s24, 1
      %p316 = scmp.lt.s32.totalorder %s25, 0
      %s317 = scalar_select %p316, %s25, 0
      %s318 = sadd.s32 %s317, %s315
      %s319 = smul.addr %s318, 8
      %s320 = scalar_lea.vmem %s0, %s319
      %p321 = pneg %p61
      %p322 = pneg %p58
      %p323 = scmp.lt.s32.totalorder %s24, 1
      %s324 = scalar_select %p323, %s24, 1
      %p325 = scmp.lt.s32.totalorder %s25, 0
      %s326 = scalar_select %p325, %s25, 0
      %p327 = scmp.lt.s32.totalorder %s26, 0
      %s328 = scalar_select %p327, %s26, 0
      %s329 = sadd.s32 %s328, %s326
      %s330 = sadd.s32 %s329, %s324
      %s331 = smul.addr %s330, 8
      %s332 = scalar_lea.vmem %s1, %s331
      %p333 = pneg %p91
      %p334 = pneg %p88
      %p335 = pneg %p112
      %p336 = pneg %p109
      %p337 = pneg %p133
      %p338 = pneg %p130
      %p339 = pneg %p154
      %p340 = pneg %p151
      %p341 = pneg %p175
      %p342 = pneg %p172
      %p343 = pneg %p196
      %p344 = pneg %p193
      %p345 = pneg %p217
      %p346 = pneg %p214
      %p347 = pneg %p247
      %p348 = pneg %p244
      %s349 = smul.u32 8, %s25
      %p350 = scmp.lt.s32.totalorder %s24, 1
      %s351 = scalar_select %p350, %s24, 1
      %p352 = scmp.lt.s32.totalorder %s349, 7
      %s353 = scalar_select %p352, %s349, 7
      %p354 = scmp.lt.s32.totalorder %s26, 0
      %s355 = scalar_select %p354, %s26, 0
      %s356 = sadd.s32 %s355, %s353
      %s357 = smul.addr %s351, 8
      %s358 = sadd.s32 %s356, %s357
      %s359 = smul.addr %s358, 8
      %s360 = scalar_lea.vmem %s8, %s359
      %p361 = scmp.lt.s32.totalorder %s24, 1
      %s362 = scalar_select %p361, %s24, 1
      %p363 = scmp.lt.s32.totalorder %s25, 0
      %s364 = scalar_select %p363, %s25, 0
      %s365 = sadd.s32 %s364, %s362
      %s366 = smul.addr %s365, 8
      %s367 = scalar_lea.vmem %s0, %s366
      %p368 = scmp.lt.s32.totalorder %s24, 1
      %s369 = scalar_select %p368, %s24, 1
      %p370 = scmp.lt.s32.totalorder %s25, 0
      %s371 = scalar_select %p370, %s25, 0
      %p372 = scmp.lt.s32.totalorder %s26, 0
      %s373 = scalar_select %p372, %s26, 0
      %s374 = sadd.s32 %s373, %s371
      %s375 = sadd.s32 %s374, %s369
      %s376 = smul.addr %s375, 8
      %s377 = scalar_lea.vmem %s1, %s376
      %s378 = smul.u32 8, %s25
      %p379 = scmp.lt.s32.totalorder %s24, 1
      %s380 = scalar_select %p379, %s24, 1
      %p381 = scmp.lt.s32.totalorder %s378, 7
      %s382 = scalar_select %p381, %s378, 7
      %p383 = scmp.lt.s32.totalorder %s26, 0
      %s384 = scalar_select %p383, %s26, 0
      %s385 = sadd.s32 %s384, %s382
      %s386 = smul.addr %s380, 8
      %s387 = sadd.s32 %s385, %s386
      %s388 = smul.addr %s387, 8
      %s389 = scalar_lea.vmem %s8, %s388
      %s390 = smul.u32 8, %s25
      %v392 = vld [vmem:[%s377] sm:$0xff]
      %v393 = vand.u32 2147483647, %v392
      %v394 = vadd.f32 %v393, 1.0
      %v395 = vlog2.pop %v394
      %v396 = vmul.f32 %v395, 0.6931472
      %v397 = vmul.f32 -0.5, %v393
      %v398 = vadd.f32 %v397, 1.0
      %v399 = vmul.f32 %v398, %v393
      %v400 = vand.u32 2147483647, %v393
      %vm401 = vcmp.lt.f32.partialorder %v400, 0.0004427343
      %v402 = vsel %vm401, %v399, %v396
      %vm403 = vcmp.gt.f32.partialorder %v392, 0.0
      %v404 = vsel %vm403, %v402, 0.0
      %vm405 = vcmp.lt.f32.partialorder %v392, 0.0
      %v406 = vsel %vm405, %v402, 0.0
      %vm407 = vcmp.eq.f32.partialorder %v392, 0.0
      %v408 = vsel %vm407, 1, 0
      %v409 = vcvt.s32.f32 %v408
      %v410 = vlaneseq
      %v411 = vshrl.u32 %v410, 7
      %v412 = vsub.s32 0, %v411
      %v413 = vrot.slane %v404, %v412
      %415 = vbcast.lane.b32.xlu0 %v413, 256
      %v416 = vpop.permute.xlu0 %415
      %v417 = vlaneseq
      %v418 = vshrl.u32 %v417, 7
      %v419 = vsub.s32 1, %v418
      %v420 = vrot.slane %v404, %v419
      %422 = vbcast.lane.b32.xlu0 %v420, 256
      %v423 = vpop.permute.xlu0 %422
      %v424 = vlaneseq
      %v425 = vshrl.u32 %v424, 7
      %v426 = vsub.s32 2, %v425
      %v427 = vrot.slane %v404, %v426
      %429 = vbcast.lane.b32.xlu0 %v427, 256
      %v430 = vpop.permute.xlu0 %429
      %v431 = vlaneseq
      %v432 = vshrl.u32 %v431, 7
      %v433 = vsub.s32 3, %v432
      %v434 = vrot.slane %v404, %v433
      %436 = vbcast.lane.b32.xlu0 %v434, 256
      %v437 = vpop.permute.xlu0 %436
      %v438 = vlaneseq
      %v439 = vshrl.u32 %v438, 7
      %v440 = vsub.s32 4, %v439
      %v441 = vrot.slane %v404, %v440
      %443 = vbcast.lane.b32.xlu0 %v441, 256
      %v444 = vpop.permute.xlu0 %443
      %v445 = vlaneseq
      %v446 = vshrl.u32 %v445, 7
      %v447 = vsub.s32 5, %v446
      %v448 = vrot.slane %v404, %v447
      %450 = vbcast.lane.b32.xlu0 %v448, 256
      %v451 = vpop.permute.xlu0 %450
      %v452 = vlaneseq
      %v453 = vshrl.u32 %v452, 7
      %v454 = vsub.s32 6, %v453
      %v455 = vrot.slane %v404, %v454
      %457 = vbcast.lane.b32.xlu0 %v455, 256
      %v458 = vpop.permute.xlu0 %457
      %v459 = vlaneseq
      %v460 = vshrl.u32 %v459, 7
      %v461 = vsub.s32 7, %v460
      %v462 = vrot.slane %v404, %v461
      %464 = vbcast.lane.b32.xlu0 %v462, 256
      %v465 = vpop.permute.xlu0 %464
      %v466 = vlaneseq
      %v467 = vshrl.u32 %v466, 7
      %v468 = vsub.s32 0, %v467
      %v469 = vrot.slane %v406, %v468
      %471 = vbcast.lane.b32.xlu0 %v469, 256
      %v472 = vpop.permute.xlu0 %471
      %v473 = vlaneseq
      %v474 = vshrl.u32 %v473, 7
      %v475 = vsub.s32 1, %v474
      %v476 = vrot.slane %v406, %v475
      %478 = vbcast.lane.b32.xlu0 %v476, 256
      %v479 = vpop.permute.xlu0 %478
      %v480 = vlaneseq
      %v481 = vshrl.u32 %v480, 7
      %v482 = vsub.s32 2, %v481
      %v483 = vrot.slane %v406, %v482
      %485 = vbcast.lane.b32.xlu0 %v483, 256
      %v486 = vpop.permute.xlu0 %485
      %v487 = vlaneseq
      %v488 = vshrl.u32 %v487, 7
      %v489 = vsub.s32 3, %v488
      %v490 = vrot.slane %v406, %v489
      %492 = vbcast.lane.b32.xlu0 %v490, 256
      %v493 = vpop.permute.xlu0 %492
      %v494 = vlaneseq
      %v495 = vshrl.u32 %v494, 7
      %v496 = vsub.s32 4, %v495
      %v497 = vrot.slane %v406, %v496
      %499 = vbcast.lane.b32.xlu0 %v497, 256
      %v500 = vpop.permute.xlu0 %499
      %v501 = vlaneseq
      %v502 = vshrl.u32 %v501, 7
      %v503 = vsub.s32 5, %v502
      %v504 = vrot.slane %v406, %v503
      %506 = vbcast.lane.b32.xlu0 %v504, 256
      %v507 = vpop.permute.xlu0 %506
      %v508 = vlaneseq
      %v509 = vshrl.u32 %v508, 7
      %v510 = vsub.s32 6, %v509
      %v511 = vrot.slane %v406, %v510
      %513 = vbcast.lane.b32.xlu0 %v511, 256
      %v514 = vpop.permute.xlu0 %513
      %v515 = vlaneseq
      %v516 = vshrl.u32 %v515, 7
      %v517 = vsub.s32 7, %v516
      %v518 = vrot.slane %v406, %v517
      %520 = vbcast.lane.b32.xlu0 %v518, 256
      %v521 = vpop.permute.xlu0 %520
      %v522 = vlaneseq
      %v523 = vshrl.u32 %v522, 7
      %v524 = vsub.s32 0, %v523
      %v525 = vrot.slane %v409, %v524
      %527 = vbcast.lane.b32.xlu0 %v525, 256
      %v528 = vpop.permute.xlu0 %527
      %v529 = vlaneseq
      %v530 = vshrl.u32 %v529, 7
      %v531 = vsub.s32 1, %v530
      %v532 = vrot.slane %v409, %v531
      %534 = vbcast.lane.b32.xlu0 %v532, 256
      %v535 = vpop.permute.xlu0 %534
      %v536 = vlaneseq
      %v537 = vshrl.u32 %v536, 7
      %v538 = vsub.s32 2, %v537
      %v539 = vrot.slane %v409, %v538
      %541 = vbcast.lane.b32.xlu0 %v539, 256
      %v542 = vpop.permute.xlu0 %541
      %v543 = vlaneseq
      %v544 = vshrl.u32 %v543, 7
      %v545 = vsub.s32 3, %v544
      %v546 = vrot.slane %v409, %v545
      %548 = vbcast.lane.b32.xlu0 %v546, 256
      %v549 = vpop.permute.xlu0 %548
      %v550 = vlaneseq
      %v551 = vshrl.u32 %v550, 7
      %v552 = vsub.s32 4, %v551
      %v553 = vrot.slane %v409, %v552
      %555 = vbcast.lane.b32.xlu0 %v553, 256
      %v556 = vpop.permute.xlu0 %555
      %v557 = vlaneseq
      %v558 = vshrl.u32 %v557, 7
      %v559 = vsub.s32 5, %v558
      %v560 = vrot.slane %v409, %v559
      %562 = vbcast.lane.b32.xlu0 %v560, 256
      %v563 = vpop.permute.xlu0 %562
      %v564 = vlaneseq
      %v565 = vshrl.u32 %v564, 7
      %v566 = vsub.s32 6, %v565
      %v567 = vrot.slane %v409, %v566
      %569 = vbcast.lane.b32.xlu0 %v567, 256
      %v570 = vpop.permute.xlu0 %569
      %v571 = vlaneseq
      %v572 = vshrl.u32 %v571, 7
      %v573 = vsub.s32 7, %v572
      %v574 = vrot.slane %v409, %v573
      %576 = vbcast.lane.b32.xlu0 %v574, 256
      %v577 = vpop.permute.xlu0 %576
      %vm578 = vcmask 7168
      %v579 = vsel %vm578, %v416, %v472
      %v580 = vsel %vm578, %v423, %v479
      %v581 = vsel %vm578, %v430, %v486
      %v582 = vsel %vm578, %v437, %v493
      %v583 = vsel %vm578, %v444, %v500
      %v584 = vsel %vm578, %v451, %v507
      %v585 = vsel %vm578, %v458, %v514
      %v586 = vsel %vm578, %v465, %v521
      %vm587 = vcmask 15360
      %v588 = vsel %vm587, %v579, %v528
      %v589 = vsel %vm587, %v580, %v535
      %v590 = vsel %vm587, %v581, %v542
      %v591 = vsel %vm587, %v582, %v549
      %v592 = vsel %vm587, %v583, %v556
      %v593 = vsel %vm587, %v584, %v563
      %v594 = vsel %vm587, %v585, %v570
      %v595 = vsel %vm587, %v586, %v577
      %vm596 = vcmask 23552
      %v597 = vsel %vm596, %v588, 0.0
      %v598 = vsel %vm596, %v589, 0.0
      %v599 = vsel %vm596, %v590, 0.0
      %v600 = vsel %vm596, %v591, 0.0
      %v601 = vsel %vm596, %v592, 0.0
      %v602 = vsel %vm596, %v593, 0.0
      %v603 = vsel %vm596, %v594, 0.0
      %v604 = vsel %vm596, %v595, 0.0
      %v605 = vpack.c.bf16 %v598, %v597
      %v606 = vpack.c.bf16 %v600, %v599
      %v607 = vpack.c.bf16 %v602, %v601
      %v608 = vpack.c.bf16 %v604, %v603
      %v609 = vld [vmem:[%s2] sm:$0xf]
      %vm610 = vcmask 64512
      %v612 = vsel %vm610, %v605, 0
      %v615 = vsel %vm610, %v606, 0
      %v618 = vsel %vm610, %v607, 0
      %v621 = vsel %vm610, %v608, 0
      %vm623 = vcmask 1043456
      %v625 = vsel %vm623, %v609, 0
      %627 = vmatprep.subr.bf16.mxu0 0
      %628 = vmatpush1.bf16.msra.mxu0 %v625
      %629 = vmatprep.subr.bf16.mxu0 0
      %630 = vmatpush1.bf16.msra.mxu0 0
      %631 = vmatprep.subr.bf16.mxu0 0
      %632 = vmatpush1.bf16.msra.mxu0 0
      %633 = vmatprep.subr.bf16.mxu0 0
      %634 = vmatpush1.bf16.msra.mxu0 0
      %635 = vmatprep.subr.bf16.mxu0 0
      %636 = vmatpush1.bf16.msra.mxu0 0
      %637 = vmatprep.subr.bf16.mxu0 0
      %638 = vmatpush1.bf16.msra.mxu0 0
      %639 = vmatprep.subr.bf16.mxu0 0
      %640 = vmatpush1.bf16.msra.mxu0 0
      %641 = vmatprep.subr.bf16.mxu0 0
      %642 = vmatpush1.bf16.msra.mxu0 0
      %643 = vmatprep.subr.bf16.mxu0 0
      %644 = vmatpush1.bf16.msra.mxu0 0
      %645 = vmatprep.subr.bf16.mxu0 0
      %646 = vmatpush1.bf16.msra.mxu0 0
      %647 = vmatprep.subr.bf16.mxu0 0
      %648 = vmatpush1.bf16.msra.mxu0 0
      %649 = vmatprep.subr.bf16.mxu0 0
      %650 = vmatpush1.bf16.msra.mxu0 0
      %651 = vmatprep.subr.bf16.mxu0 0
      %652 = vmatpush1.bf16.msra.mxu0 0
      %653 = vmatprep.subr.bf16.mxu0 0
      %654 = vmatpush1.bf16.msra.mxu0 0
      %655 = vmatprep.subr.bf16.mxu0 0
      %656 = vmatpush1.bf16.msra.mxu0 0
      %657 = vmatprep.subr.bf16.mxu0 0
      %658 = vmatpush1.bf16.msra.mxu0 0
      %659 = vmatprep.mubr.bf16.mxu0 0
      %660 = vmatmul.mubr.bf16.gmra.mrb[0].mxu0 %v612
      %v661 = vpop.f32.mrb[0].mxu0
      %v662 = vadd.f32 0.0, %v661
      %v663 = vpop.f32.mrb[0].mxu0
      %v664 = vpop.f32.mrb[0].mxu0
      %v665 = vadd.f32 0.0, %v664
      %v666 = vpop.f32.mrb[0].mxu0
      %667 = vmatprep.mubr.bf16.mxu0 0
      %668 = vmatmul.mubr.bf16.gmra.mrb[0].mxu0 %v615
      %v669 = vpop.f32.mrb[0].mxu0
      %v670 = vadd.f32 0.0, %v669
      %v671 = vpop.f32.mrb[0].mxu0
      %v672 = vpop.f32.mrb[0].mxu0
      %v673 = vadd.f32 0.0, %v672
      %v674 = vpop.f32.mrb[0].mxu0
      %675 = vmatprep.mubr.bf16.mxu0 0
      %676 = vmatmul.mubr.bf16.gmra.mrb[0].mxu0 %v618
      %v677 = vpop.f32.mrb[0].mxu0
      %v678 = vadd.f32 0.0, %v677
      %v679 = vpop.f32.mrb[0].mxu0
      %v680 = vpop.f32.mrb[0].mxu0
      %v681 = vadd.f32 0.0, %v680
      %v682 = vpop.f32.mrb[0].mxu0
      %683 = vmatprep.mubr.bf16.mxu0 0
      %684 = vmatmul.mubr.bf16.gmra.mrb[0].mxu0 %v621
      %v685 = vpop.f32.mrb[0].mxu0
      %v686 = vadd.f32 0.0, %v685
      %v687 = vpop.f32.mrb[0].mxu0
      %v688 = vpop.f32.mrb[0].mxu0
      %v689 = vadd.f32 0.0, %v688
      %v690 = vpop.f32.mrb[0].mxu0
      %691 = vdwg.mxu0
      %v692 = vld [vmem:[%s367] sm:$0xff]
      %v693 = vpack.c.bf16 %v692, %v692
      %v694 = vld [vmem:[%s4] sm:$0xf]
      %v695 = vld [vmem:[%s4 + $0x4] sm:$0xf]
      %v696 = vld [vmem:[%s4 + $0x8] sm:$0xf]
      %v697 = vld [vmem:[%s4 + $0xc] sm:$0xf]
      %v698 = vld [vmem:[%s5] sm:$0x1]
      %v700 = vlaneseq
      %v701 = vshrl.u32 %v700, 7
      %v702 = vsub.s32 0, %v701
      %v703 = vrot.slane %v698, %v702
      %v709 = vunpack.c.l.b16 %v694
      %v710 = vunpack.c.l.b16 %v695
      %v711 = vunpack.c.l.b16 %v696
      %v712 = vunpack.c.l.b16 %v697
      %v713 = vpack.c.b16 %v710, %v709
      %v714 = vpack.c.b16 %v712, %v711
      %vm717 = vcmask 261120
      %v719 = vsel %vm717, %v693, 0
      %721 = vmatprep.subr.bf16.mxu0 0
      %722 = vmatpush1.bf16.msra.mxu0 %v713
      %723 = vmatprep.subr.bf16.mxu0 0
      %724 = vmatpush1.bf16.msra.mxu0 %v714
      %725 = vmatprep.subr.bf16.mxu0 0
      %726 = vmatpush1.bf16.msra.mxu0 0
      %727 = vmatprep.subr.bf16.mxu0 0
      %728 = vmatpush1.bf16.msra.mxu0 0
      %729 = vmatprep.subr.bf16.mxu0 0
      %730 = vmatpush1.bf16.msra.mxu0 0
      %731 = vmatprep.subr.bf16.mxu0 0
      %732 = vmatpush1.bf16.msra.mxu0 0
      %733 = vmatprep.subr.bf16.mxu0 0
      %734 = vmatpush1.bf16.msra.mxu0 0
      %735 = vmatprep.subr.bf16.mxu0 0
      %736 = vmatpush1.bf16.msra.mxu0 0
      %737 = vmatprep.subr.bf16.mxu0 0
      %738 = vmatpush1.bf16.msra.mxu0 0
      %739 = vmatprep.subr.bf16.mxu0 0
      %740 = vmatpush1.bf16.msra.mxu0 0
      %741 = vmatprep.subr.bf16.mxu0 0
      %742 = vmatpush1.bf16.msra.mxu0 0
      %743 = vmatprep.subr.bf16.mxu0 0
      %744 = vmatpush1.bf16.msra.mxu0 0
      %745 = vmatprep.subr.bf16.mxu0 0
      %746 = vmatpush1.bf16.msra.mxu0 0
      %747 = vmatprep.subr.bf16.mxu0 0
      %748 = vmatpush1.bf16.msra.mxu0 0
      %749 = vmatprep.subr.bf16.mxu0 0
      %750 = vmatpush1.bf16.msra.mxu0 0
      %751 = vmatprep.subr.bf16.mxu0 0
      %752 = vmatpush1.bf16.msra.mxu0 0
      %753 = vmatprep.mubr.bf16.mxu0 0
      %754 = vmatmul.mubr.bf16.gmra.mrb[0].mxu0 %v719
      %v755 = vpop.f32.mrb[0].mxu0
      %v756 = vadd.f32 %v703, %v755
      %v757 = vpop.f32.mrb[0].mxu0
      %v758 = vpop.f32.mrb[0].mxu0
      %v759 = vpop.f32.mrb[0].mxu0
      %760 = vdwg.mxu0
      %v761 = vld [vmem:[%s3] sm:$0x1]
      %v763 = vlaneseq
      %v764 = vshrl.u32 %v763, 7
      %v765 = vsub.s32 0, %v764
      %v766 = vrot.slane %v761, %v765
      %v768 = vadd.f32 %v756, %v766
      %v770 = vcombine.high %v768, %v768
      %v772 = vunpack.c.l.s4 1966171168
      %v773 = vunpack.c.0.s8 %v772
      %v774 = vlaneseq
      %v775 = vshrl.u32 %v774, 7
      %v776 = vsub.s32 %v773, %v775
      %v777 = vrot.slane %v768, %v776
      %v779 = vunpack.c.l.s4 1966171168
      %v780 = vunpack.c.0.s8 %v779
      %v781 = vlaneseq
      %v782 = vshrl.u32 %v781, 7
      %v783 = vsub.s32 %v780, %v782
      %v784 = vrot.slane %v770, %v783
      %v785 = vcombine.high %v777, %v777
      %v786 = vcombine.high %v784, %v784
      %v788 = vunpack.c.l.s4 1966171168
      %v789 = vunpack.c.0.s8 %v788
      %v790 = vlaneseq
      %v791 = vshrl.u32 %v790, 7
      %v792 = vsub.s32 %v789, %v791
      %v793 = vrot.slane %v777, %v792
      %v795 = vunpack.c.l.s4 1966171168
      %v796 = vunpack.c.0.s8 %v795
      %v797 = vlaneseq
      %v798 = vshrl.u32 %v797, 7
      %v799 = vsub.s32 %v796, %v798
      %v800 = vrot.slane %v784, %v799
      %v802 = vunpack.c.l.s4 1966171168
      %v803 = vunpack.c.0.s8 %v802
      %v804 = vlaneseq
      %v805 = vshrl.u32 %v804, 7
      %v806 = vsub.s32 %v803, %v805
      %v807 = vrot.slane %v785, %v806
      %v809 = vunpack.c.l.s4 1966171168
      %v810 = vunpack.c.0.s8 %v809
      %v811 = vlaneseq
      %v812 = vshrl.u32 %v811, 7
      %v813 = vsub.s32 %v810, %v812
      %v814 = vrot.slane %v786, %v813
      %v815 = vcombine.high %v793, %v793
      %v816 = vcombine.high %v800, %v800
      %v817 = vcombine.high %v807, %v807
      %v818 = vcombine.high %v814, %v814
      %v819 = vlaneseq
      %v820 = vshrl.u32 %v819, 7
      %v821 = vsub.s32 0, %v820
      %v822 = vrot.slane %v793, %v821
      %v823 = vlaneseq
      %v824 = vshrl.u32 %v823, 7
      %v825 = vsub.s32 0, %v824
      %v826 = vrot.slane %v807, %v825
      %v827 = vlaneseq
      %v828 = vshrl.u32 %v827, 7
      %v829 = vsub.s32 0, %v828
      %v830 = vrot.slane %v815, %v829
      %v831 = vlaneseq
      %v832 = vshrl.u32 %v831, 7
      %v833 = vsub.s32 0, %v832
      %v834 = vrot.slane %v817, %v833
      %v835 = vlaneseq
      %v836 = vshrl.u32 %v835, 7
      %v837 = vsub.s32 0, %v836
      %v838 = vrot.slane %v800, %v837
      %v839 = vlaneseq
      %v840 = vshrl.u32 %v839, 7
      %v841 = vsub.s32 0, %v840
      %v842 = vrot.slane %v814, %v841
      %v843 = vlaneseq
      %v844 = vshrl.u32 %v843, 7
      %v845 = vsub.s32 0, %v844
      %v846 = vrot.slane %v816, %v845
      %v847 = vlaneseq
      %v848 = vshrl.u32 %v847, 7
      %v849 = vsub.s32 0, %v848
      %v850 = vrot.slane %v818, %v849
      %v859 = vadd.f32 %v662, %v822
      %v860 = vadd.f32 %v665, %v826
      %v861 = vadd.f32 %v670, %v830
      %v862 = vadd.f32 %v673, %v834
      %v863 = vadd.f32 %v678, %v838
      %v864 = vadd.f32 %v681, %v842
      %v865 = vadd.f32 %v686, %v846
      %v866 = vadd.f32 %v689, %v850
      %v867 = vsub.f32 0.0, %v859
      %v868 = vsub.f32 0.0, %v860
      %v869 = vsub.f32 0.0, %v861
      %v870 = vsub.f32 0.0, %v862
      %v871 = vsub.f32 0.0, %v863
      %v872 = vsub.f32 0.0, %v864
      %v873 = vsub.f32 0.0, %v865
      %v874 = vsub.f32 0.0, %v866
      %v875 = vmul.f32 %v867, 1.442695
      %v876 = vpow.pop %v875
      %v877 = vmul.f32 %v868, 1.442695
      %v878 = vpow.pop %v877
      %v879 = vmul.f32 %v869, 1.442695
      %v880 = vpow.pop %v879
      %v881 = vmul.f32 %v870, 1.442695
      %v882 = vpow.pop %v881
      %v883 = vmul.f32 %v871, 1.442695
      %v884 = vpow.pop %v883
      %v885 = vmul.f32 %v872, 1.442695
      %v886 = vpow.pop %v885
      %v887 = vmul.f32 %v873, 1.442695
      %v888 = vpow.pop %v887
      %v889 = vmul.f32 %v874, 1.442695
      %v890 = vpow.pop %v889
      %v891 = vadd.f32 %v876, 1.0
      %v892 = vadd.f32 %v878, 1.0
      %v893 = vadd.f32 %v880, 1.0
      %v894 = vadd.f32 %v882, 1.0
      %v895 = vadd.f32 %v884, 1.0
      %v896 = vadd.f32 %v886, 1.0
      %v897 = vadd.f32 %v888, 1.0
      %v898 = vadd.f32 %v890, 1.0
      %v899 = vrcp.pop %v891
      %v900 = vrcp.pop %v892
      %v901 = vrcp.pop %v893
      %v902 = vrcp.pop %v894
      %v903 = vrcp.pop %v895
      %v904 = vrcp.pop %v896
      %v905 = vrcp.pop %v897
      %v906 = vrcp.pop %v898
      %v907 = vmul.f32 %v859, %v899
      %v908 = vmul.f32 %v860, %v900
      %v909 = vmul.f32 %v861, %v901
      %v910 = vmul.f32 %v862, %v902
      %v911 = vmul.f32 %v863, %v903
      %v912 = vmul.f32 %v864, %v904
      %v913 = vmul.f32 %v865, %v905
      %v914 = vmul.f32 %v866, %v906
      %v915 = vpack.c.bf16 %v907, %v907
      %v916 = vpack.c.bf16 %v908, %v908
      %v917 = vpack.c.bf16 %v909, %v909
      %v918 = vpack.c.bf16 %v910, %v910
      %v919 = vpack.c.bf16 %v911, %v911
      %v920 = vpack.c.bf16 %v912, %v912
      %v921 = vpack.c.bf16 %v913, %v913
      %v922 = vpack.c.bf16 %v914, %v914
      %v923 = vld [vmem:[%s6] sm:$0xf]
      %v924 = vld [vmem:[%s6 + $0x4] sm:$0xf]
      %v925 = vld [vmem:[%s6 + $0x8] sm:$0xf]
      %v926 = vld [vmem:[%s6 + $0xc] sm:$0xf]
      %v927 = vld [vmem:[%s6 + $0x10] sm:$0xf]
      %v928 = vld [vmem:[%s6 + $0x14] sm:$0xf]
      %v929 = vld [vmem:[%s6 + $0x18] sm:$0xf]
      %v930 = vld [vmem:[%s6 + $0x1c] sm:$0xf]
      %v931 = vld [vmem:[%s6 + $0x20] sm:$0xf]
      %v932 = vld [vmem:[%s6 + $0x24] sm:$0xf]
      %v933 = vld [vmem:[%s6 + $0x28] sm:$0xf]
      %v934 = vld [vmem:[%s6 + $0x2c] sm:$0xf]
      %v935 = vld [vmem:[%s6 + $0x30] sm:$0xf]
      %v936 = vld [vmem:[%s6 + $0x34] sm:$0xf]
      %v937 = vld [vmem:[%s6 + $0x38] sm:$0xf]
      %v938 = vld [vmem:[%s6 + $0x3c] sm:$0xf]
      %v939 = vld [vmem:[%s7] sm:$0x1]
      %v941 = vlaneseq
      %v942 = vshrl.u32 %v941, 7
      %v943 = vsub.s32 0, %v942
      %v944 = vrot.slane %v939, %v943
      %v954 = vunpack.c.l.b16 %v915
      %v955 = vunpack.c.l.b16 %v916
      %v956 = vunpack.c.l.b16 %v917
      %v957 = vunpack.c.l.b16 %v918
      %v958 = vunpack.c.l.b16 %v919
      %v959 = vunpack.c.l.b16 %v920
      %v960 = vunpack.c.l.b16 %v921
      %v961 = vunpack.c.l.b16 %v922
      %v962 = vpack.c.b16 %v955, %v954
      %v963 = vpack.c.b16 %v957, %v956
      %v964 = vpack.c.b16 %v959, %v958
      %v965 = vpack.c.b16 %v961, %v960
      %v986 = vunpack.c.l.b16 %v923
      %v987 = vunpack.c.l.b16 %v924
      %v988 = vunpack.c.l.b16 %v925
      %v989 = vunpack.c.l.b16 %v926
      %v990 = vunpack.c.l.b16 %v927
      %v991 = vunpack.c.l.b16 %v928
      %v992 = vunpack.c.l.b16 %v929
      %v993 = vunpack.c.l.b16 %v930
      %v994 = vunpack.c.l.b16 %v931
      %v995 = vunpack.c.l.b16 %v932
      %v996 = vunpack.c.l.b16 %v933
      %v997 = vunpack.c.l.b16 %v934
      %v998 = vunpack.c.l.b16 %v935
      %v999 = vunpack.c.l.b16 %v936
      %v1000 = vunpack.c.l.b16 %v937
      %v1001 = vunpack.c.l.b16 %v938
      %v1002 = vpack.c.b16 %v987, %v986
      %v1003 = vpack.c.b16 %v989, %v988
      %v1004 = vpack.c.b16 %v991, %v990
      %v1005 = vpack.c.b16 %v993, %v992
      %v1006 = vpack.c.b16 %v995, %v994
      %v1007 = vpack.c.b16 %v997, %v996
      %v1008 = vpack.c.b16 %v999, %v998
      %v1009 = vpack.c.b16 %v1001, %v1000
      %1018 = vmatprep.subr.bf16.mxu0 0
      %1019 = vmatpush1.bf16.msra.mxu0 %v1002
      %1020 = vmatprep.subr.bf16.mxu0 0
      %1021 = vmatpush1.bf16.msra.mxu0 %v1003
      %1022 = vmatprep.subr.bf16.mxu0 0
      %1023 = vmatpush1.bf16.msra.mxu0 %v1004
      %1024 = vmatprep.subr.bf16.mxu0 0
      %1025 = vmatpush1.bf16.msra.mxu0 %v1005
      %1026 = vmatprep.subr.bf16.mxu0 0
      %1027 = vmatpush1.bf16.msra.mxu0 %v1006
      %1028 = vmatprep.subr.bf16.mxu0 0
      %1029 = vmatpush1.bf16.msra.mxu0 %v1007
      %1030 = vmatprep.subr.bf16.mxu0 0
      %1031 = vmatpush1.bf16.msra.mxu0 %v1008
      %1032 = vmatprep.subr.bf16.mxu0 0
      %1033 = vmatpush1.bf16.msra.mxu0 %v1009
      %1034 = vmatprep.subr.bf16.mxu0 0
      %1035 = vmatpush1.bf16.msra.mxu0 0
      %1036 = vmatprep.subr.bf16.mxu0 0
      %1037 = vmatpush1.bf16.msra.mxu0 0
      %1038 = vmatprep.subr.bf16.mxu0 0
      %1039 = vmatpush1.bf16.msra.mxu0 0
      %1040 = vmatprep.subr.bf16.mxu0 0
      %1041 = vmatpush1.bf16.msra.mxu0 0
      %1042 = vmatprep.subr.bf16.mxu0 0
      %1043 = vmatpush1.bf16.msra.mxu0 0
      %1044 = vmatprep.subr.bf16.mxu0 0
      %1045 = vmatpush1.bf16.msra.mxu0 0
      %1046 = vmatprep.subr.bf16.mxu0 0
      %1047 = vmatpush1.bf16.msra.mxu0 0
      %1048 = vmatprep.subr.bf16.mxu0 0
      %1049 = vmatpush1.bf16.msra.mxu0 0
      %1050 = vmatprep.mubr.bf16.mxu0 0
      %1051 = vmatmul.mubr.bf16.gmra.mrb[0].mxu0 %v962
      %v1052 = vpop.f32.mrb[0].mxu0
      %v1053 = vadd.f32 %v944, %v1052
      %v1054 = vpop.f32.mrb[0].mxu0
      %v1055 = vpop.f32.mrb[0].mxu0
      %v1056 = vadd.f32 %v944, %v1055
      %v1057 = vpop.f32.mrb[0].mxu0
      %1058 = vmatprep.mubr.bf16.mxu0 0
      %1059 = vmatmul.mubr.bf16.gmra.mrb[0].mxu0 %v963
      %v1060 = vpop.f32.mrb[0].mxu0
      %v1061 = vadd.f32 %v944, %v1060
      %v1062 = vpop.f32.mrb[0].mxu0
      %v1063 = vpop.f32.mrb[0].mxu0
      %v1064 = vadd.f32 %v944, %v1063
      %v1065 = vpop.f32.mrb[0].mxu0
      %1066 = vmatprep.mubr.bf16.mxu0 0
      %1067 = vmatmul.mubr.bf16.gmra.mrb[0].mxu0 %v964
      %v1068 = vpop.f32.mrb[0].mxu0
      %v1069 = vadd.f32 %v944, %v1068
      %v1070 = vpop.f32.mrb[0].mxu0
      %v1071 = vpop.f32.mrb[0].mxu0
      %v1072 = vadd.f32 %v944, %v1071
      %v1073 = vpop.f32.mrb[0].mxu0
      %1074 = vmatprep.mubr.bf16.mxu0 0
      %1075 = vmatmul.mubr.bf16.gmra.mrb[0].mxu0 %v965
      %v1076 = vpop.f32.mrb[0].mxu0
      %v1077 = vadd.f32 %v944, %v1076
      %v1078 = vpop.f32.mrb[0].mxu0
      %v1079 = vpop.f32.mrb[0].mxu0
      %v1080 = vadd.f32 %v944, %v1079
      %v1081 = vpop.f32.mrb[0].mxu0
      %1082 = vdwg.mxu0
      %1083 = vst.msk [vmem:[%s389] sm:$0xff] %vm717, %v1053
      %1084 = vst.msk [vmem:[%s389 + $0x8] sm:$0xff] %vm717, %v1056
      %1085 = vst.msk [vmem:[%s389 + $0x10] sm:$0xff] %vm717, %v1061
      %1086 = vst.msk [vmem:[%s389 + $0x18] sm:$0xff] %vm717, %v1064
      %1087 = vst.msk [vmem:[%s389 + $0x20] sm:$0xff] %vm717, %v1069
      %1088 = vst.msk [vmem:[%s389 + $0x28] sm:$0xff] %vm717, %v1072
      %1089 = vst.msk [vmem:[%s389 + $0x30] sm:$0xff] %vm717, %v1077
      %1090 = vst.msk [vmem:[%s389 + $0x38] sm:$0xff] %vm717, %v1080
      %s1091 = smul.u32 8, %s25
      %p1092 = scmp.lt.s32.totalorder %s24, 1
      %s1093 = scalar_select %p1092, %s24, 1
      %p1094 = scmp.lt.s32.totalorder %s1091, 7
      %s1095 = scalar_select %p1094, %s1091, 7
      %p1096 = scmp.lt.s32.totalorder %s26, 0
      %s1097 = scalar_select %p1096, %s26, 0
      %s1098 = sadd.s32 %s1097, %s1095
      %s1099 = smul.addr %s1093, 8
      %s1100 = sadd.s32 %s1098, %s1099
      %s1101 = smul.addr %s1100, 8
      %s1102 = scalar_lea.vmem %s8, %s1101
      // Predicated region
      $region53: #{rpenet_forward.1} parent=51 // pred_check
        %p1103 = pneg %p244
      $region54: #{rpenet_forward.1} parent=51 // pred_check_branch
        %1105 = sbr.rel (%p1103) target = $region56
      $region55: #{rpenet_forward.1} parent=51 // pred_region
        %s1106 = smul.u32 8, %s25
      $region56: #{rpenet_forward.1} parent=51 // pred_fallthru
        _
    $region52: #{rpenet_forward.1} parent=5 // pred_fallthru
      _
    %p1107 = scmp.le.s32.totalorder 2, %s14
    // Predicated region
    $region57: #{rpenet_forward.1} parent=5 // pred_check
      %p1108 = pneg %p1107
    $region58: #{rpenet_forward.1} parent=5 // pred_check_branch
      %1110 = sbr.rel (%p1108) target = $region60
    $region59: #{rpenet_forward.1} parent=5 // pred_region
      %s1111 = ssub.s32 %s14, 2
      // Predicated region
      $region61: #{rpenet_forward.1} parent=59 // pred_check
        %p1112 = pneg %p250
      $region62: #{rpenet_forward.1} parent=59 // pred_check_branch
        %1114 = sbr.rel (%p1112) target = $region64
      $region63: #{rpenet_forward.1} parent=59 // pred_region
        %s1115 = smul.u32 8, %s28
        %p1116 = scmp.lt.s32.totalorder %s27, 1
        %s1117 = scalar_select %p1116, %s27, 1
        %p1118 = scmp.lt.s32.totalorder %s1115, 7
        %s1119 = scalar_select %p1118, %s1115, 7
        %p1120 = scmp.lt.s32.totalorder %s29, 0
        %s1121 = scalar_select %p1120, %s29, 0
        %s1122 = sadd.s32 %s1121, %s1119
        %s1123 = smul.addr %s1117, 8
        %s1124 = sadd.s32 %s1122, %s1123
        %s1125 = smul.addr %s1124, 8
        %s1126 = scalar_lea.vmem %s8, %s1125
      $region64: #{rpenet_forward.1} parent=59 // pred_fallthru
        _
    $region60: #{rpenet_forward.1} parent=5 // pred_fallthru
      _
  $region6: #{rpenet_forward.1} parent=0 // loop_footer
    %s18 = sadd.s32 1, %s14
  $region7: #{rpenet_forward.1} parent=0 // loop_footer_branch
    %13 = sbr.rel target = $region3
  $region8: #{rpenet_forward.1} parent=0 // loop_exit
    _

</llo_original>
